<compile_context>
chip_gen: v6e
topology: v6e:2x2x1
jax: 0.10.0
libtpu: 0.0.40
codegen_flags: <defaults>
</compile_context>

<pallas_src>
import functools
import math

import jax
import jax.numpy as jnp
from jax import lax
from jax.experimental import pallas as pl
from jax.experimental.pallas import tpu as pltpu


# ---------------------------------------------------------------------------
# Sizing helpers
# ---------------------------------------------------------------------------
_PIPELINE_BUDGET_BYTES = 16 * 1024 * 1024   # in/out slabs (x2 buffers) + f32 temps
_MIN_GRID_STEPS = 4                          # >= 2 blocks per TensorCore on v7x
_LANE = 128
_SUBLANE = 8
_MAX_PACKED_WIDTH = 4096                     # cap on packed row width G*C


def _round_up(x, m):
    return ((x + m - 1) // m) * m


def _bytes_per_elem(itemsize):
    # in + out, double-buffered, at x.dtype, plus ~5 fp32 in-kernel temps.
    return 4 * itemsize + 20


def _vmem_limit(block_elems_padded, itemsize):
    # Actual block footprint + headroom for params/seg matrices/Mosaic scratch.
    need = block_elems_padded * _bytes_per_elem(itemsize) + (8 << 20)
    return int(min(100 << 20, max(24 << 20, need)))


def _pick_row_tile(M, row_width_padded, itemsize):
    """Row tile for a (rows, width) layout with `width` on the lane axis."""
    per_row = row_width_padded * _bytes_per_elem(itemsize)
    tm = _PIPELINE_BUDGET_BYTES // per_row
    tm = max(_SUBLANE, min(4096, (tm // _SUBLANE) * _SUBLANE))
    tm = min(tm, _round_up(M, _SUBLANE))
    # v7x shards "parallel" axes over 2 TensorCores: aim for >= 2 blocks per
    # core (>= 4 total) so each core double-buffers its DMA.
    if M > _MIN_GRID_STEPS * _SUBLANE and pl.cdiv(M, tm) < _MIN_GRID_STEPS:
        tm = max(_SUBLANE, _round_up(pl.cdiv(M, _MIN_GRID_STEPS), _SUBLANE))
    return tm


def _pick_cf_tiles(N, C, HW, itemsize):
    """(batch tile, lane tile) for the (N, C, HW) channels_first layout."""
    c_sub = _round_up(C, _SUBLANE)
    bpe = _bytes_per_elem(itemsize)
    hw_pad = _round_up(HW, _LANE)
    max_lanes = _PIPELINE_BUDGET_BYTES // (c_sub * bpe)
    max_lanes = max(_LANE, (max_lanes // _LANE) * _LANE)
    if hw_pad <= max_lanes:
        # Whole spatial extent fits in one block: block several batch items
        # per grid step (small-HW ConvNeXt stages) to amortize step overhead.
        tl = HW
        bn = max(1, min(N, _PIPELINE_BUDGET_BYTES // (c_sub * hw_pad * bpe)))
        if N >= _MIN_GRID_STEPS and pl.cdiv(N, bn) < _MIN_GRID_STEPS:
            bn = max(1, pl.cdiv(N, _MIN_GRID_STEPS))
    else:
        bn = 1
        tl = min(max_lanes, hw_pad)
        if N * pl.cdiv(HW, tl) < _MIN_GRID_STEPS:
            steps = pl.cdiv(_MIN_GRID_STEPS, N)
            tl = max(_LANE, _round_up(pl.cdiv(HW, steps), _LANE))
    return bn, tl


def _pack_factor(C):
    """Smallest G with (G * C) % 128 == 0."""
    return _LANE // math.gcd(C, _LANE)


# ---------------------------------------------------------------------------
# Kernels
# ---------------------------------------------------------------------------
def _ln_lanes_kernel(x_ref, w_ref, b_ref, o_ref, *, eps, inv_c):
    # channels_last, C % 128 == 0 (or fallback): rows on sublanes, C on lanes.
    # Row reductions go through the MXU (dot with a ones column).
    x = x_ref[...].astype(jnp.float32)                           # (tm, C)
    ones = jnp.ones((x.shape[-1], 1), jnp.float32)
    mu = jnp.dot(x, ones, preferred_element_type=jnp.float32) * inv_c     # (tm, 1)
    xc = x - mu
    var = jnp.dot(xc * xc, ones, preferred_element_type=jnp.float32) * inv_c
    y = xc * lax.rsqrt(var + eps)                                # biased var, torch-style
    y = y * w_ref[...].astype(jnp.float32) + b_ref[...].astype(jnp.float32)
    o_ref[...] = y.astype(o_ref.dtype)


def _ln_packed_kernel(x_ref, w_ref, b_ref, seg_ref, segt_ref, o_ref, *, eps, inv_c):
    # channels_last, row-packed: each physical row holds G logical rows of C
    # channels (G*C lanes, lane-dense).  seg is the (G*C, G) 0/1 block-diagonal
    # segment matrix; per-segment sums / broadcasts run on the MXU.
    x = x_ref[...].astype(jnp.float32)                           # (tm, GC)
    seg = seg_ref[...]                                           # (GC, G)
    segt = segt_ref[...]                                         # (G, GC)
    mu = jnp.dot(x, seg, preferred_element_type=jnp.float32) * inv_c       # (tm, G)
    mu_full = jnp.dot(mu, segt, preferred_element_type=jnp.float32)        # (tm, GC)
    xc = x - mu_full
    var = jnp.dot(xc * xc, seg, preferred_element_type=jnp.float32) * inv_c
    r = lax.rsqrt(var + eps)                                     # (tm, G)
    r_full = jnp.dot(r, segt, preferred_element_type=jnp.float32)          # (tm, GC)
    y = xc * r_full * w_ref[...] + b_ref[...]
    o_ref[...] = y.astype(o_ref.dtype)


def _ln_sublanes_kernel(x_ref, w_ref, b_ref, o_ref, *, eps):
    # channels_first: (bn, C, tl) block; C on sublanes, spatial tile on lanes.
    x = x_ref[...].astype(jnp.float32)                           # (bn, C, tl)
    mu = jnp.mean(x, axis=1, keepdims=True)
    xc = x - mu
    var = jnp.mean(xc * xc, axis=1, keepdims=True)               # biased, matches torch
    y = xc * lax.rsqrt(var + eps)
    y = y * w_ref[...].astype(jnp.float32) + b_ref[...].astype(jnp.float32)
    o_ref[...] = y.astype(o_ref.dtype)


# ---------------------------------------------------------------------------
# pallas_call wrappers
# ---------------------------------------------------------------------------
def _cl_plain(x2d, weight, bias, eps):
    """channels_last, unpacked path (C a multiple of 128, or fallback)."""
    M, C = x2d.shape
    itemsize = x2d.dtype.itemsize
    tm = _pick_row_tile(M, _round_up(C, _LANE), itemsize)
    grid_m = pl.cdiv(M, tm)
    w2d = weight.reshape(1, C).astype(jnp.float32)
    b2d = bias.reshape(1, C).astype(jnp.float32)
    kernel = functools.partial(_ln_lanes_kernel, eps=eps, inv_c=1.0 / C)

    return pl.pallas_call(
        kernel,
        out_shape=jax.ShapeDtypeStruct((M, C), x2d.dtype),
        grid_spec=pltpu.PrefetchScalarGridSpec(
            num_scalar_prefetch=0,
            grid=(grid_m,),
            in_specs=[
                pl.BlockSpec((tm, C), lambda i: (i, 0)),
                pl.BlockSpec((1, C), lambda i: (0, 0)),
                pl.BlockSpec((1, C), lambda i: (0, 0)),
            ],
            out_specs=pl.BlockSpec((tm, C), lambda i: (i, 0)),
        ),
        compiler_params=pltpu.CompilerParams(
            dimension_semantics=("parallel",),
            vmem_limit_bytes=_vmem_limit(tm * _round_up(C, _LANE), itemsize),
        ),
    )(x2d, w2d, b2d)


def _cl_packed(x2d, weight, bias, eps, G):
    """channels_last, row-packed path: (M, C) -> (M/G, G*C), lane-dense."""
    M, C = x2d.shape
    GC = G * C
    Mp = _round_up(M, G)
    if Mp != M:
        x2d = jnp.pad(x2d, ((0, Mp - M), (0, 0)))
    Mg = Mp // G
    xg = x2d.reshape(Mg, GC)                     # free row-major reshape
    itemsize = x2d.dtype.itemsize
    tm = _pick_row_tile(Mg, GC, itemsize)
    grid_m = pl.cdiv(Mg, tm)

    w32 = weight.astype(jnp.float32)
    b32 = bias.astype(jnp.float32)
    wp = jnp.tile(w32, G).reshape(1, GC)
    bp = jnp.tile(b32, G).reshape(1, GC)
    # 0/1 block-diagonal segment matrix and its transpose (tiny, resident).
    seg = (jnp.arange(GC)[:, None] // C == jnp.arange(G)[None, :]).astype(jnp.float32)
    segt = jnp.transpose(seg)

    kernel = functools.partial(_ln_packed_kernel, eps=eps, inv_c=1.0 / C)
    yg = pl.pallas_call(
        kernel,
        out_shape=jax.ShapeDtypeStruct((Mg, GC), x2d.dtype),
        grid_spec=pltpu.PrefetchScalarGridSpec(
            num_scalar_prefetch=0,
            grid=(grid_m,),
            in_specs=[
                pl.BlockSpec((tm, GC), lambda i: (i, 0)),
                pl.BlockSpec((1, GC), lambda i: (0, 0)),
                pl.BlockSpec((1, GC), lambda i: (0, 0)),
                pl.BlockSpec((GC, G), lambda i: (0, 0)),
                pl.BlockSpec((G, GC), lambda i: (0, 0)),
            ],
            out_specs=pl.BlockSpec((tm, GC), lambda i: (i, 0)),
        ),
        compiler_params=pltpu.CompilerParams(
            dimension_semantics=("parallel",),
            vmem_limit_bytes=_vmem_limit(tm * GC, itemsize),
        ),
    )(xg, wp, bp, seg, segt)

    y = yg.reshape(Mp, C)
    if Mp != M:
        y = y[:M]
    return y


def _layernorm_channels_last(x2d, weight, bias, eps):
    """x2d: (M, C) -> layer-normed (M, C); reduction over the last axis."""
    _, C = x2d.shape
    if C % _LANE != 0:
        G = _pack_factor(C)
        if G * C <= _MAX_PACKED_WIDTH:
            return _cl_packed(x2d, weight, bias, eps, G)
    return _cl_plain(x2d, weight, bias, eps)


def _layernorm_channels_first(x3d, weight, bias, eps):
    """x3d: (N, C, HW) -> layer-normed over axis 1. No transpose anywhere."""
    N, C, HW = x3d.shape
    itemsize = x3d.dtype.itemsize
    bn, tl = _pick_cf_tiles(N, C, HW, itemsize)
    grid = (pl.cdiv(N, bn), pl.cdiv(HW, tl))
    wc = weight.reshape(C, 1).astype(jnp.float32)
    bc = bias.reshape(C, 1).astype(jnp.float32)
    kernel = functools.partial(_ln_sublanes_kernel, eps=eps)

    return pl.pallas_call(
        kernel,
        out_shape=jax.ShapeDtypeStruct((N, C, HW), x3d.dtype),
        grid_spec=pltpu.PrefetchScalarGridSpec(
            num_scalar_prefetch=0,
            grid=grid,
            in_specs=[
                pl.BlockSpec((bn, C, tl), lambda n, l: (n, 0, l)),
                pl.BlockSpec((C, 1), lambda n, l: (0, 0)),
                pl.BlockSpec((C, 1), lambda n, l: (0, 0)),
            ],
            out_specs=pl.BlockSpec((bn, C, tl), lambda n, l: (n, 0, l)),
        ),
        compiler_params=pltpu.CompilerParams(
            dimension_semantics=("parallel", "parallel"),
            vmem_limit_bytes=_vmem_limit(
                bn * _round_up(C, _SUBLANE) * _round_up(tl, _LANE), itemsize),
        ),
    )(x3d, wc, bc)


# ---------------------------------------------------------------------------
# Module wrapper (mirrors superlightnet.LayerNorm forward semantics)
# ---------------------------------------------------------------------------
class LayerNormPallas:
    def __init__(self, normalized_shape, eps=1e-6, data_format="channels_last"):
        if data_format not in ["channels_last", "channels_first"]:
            raise NotImplementedError
        self.C = int(normalized_shape)
        self.eps = float(eps)
        self.data_format = data_format
        # Deterministic init, exactly as nn.Module __init__: ones / zeros.
        self.weight = jnp.ones((self.C,), dtype=jnp.float32)
        self.bias = jnp.zeros((self.C,), dtype=jnp.float32)

    def __call__(self, x):
        if self.data_format == "channels_last":
            # x: (..., C); normalize over the last dim (== F.layer_norm).
            lead = x.shape[:-1]
            x2d = x.reshape(-1, self.C)
            y2d = _layernorm_channels_last(x2d, self.weight, self.bias, self.eps)
            return y2d.reshape(*lead, self.C)
        else:
            # channels_first: x is (N, C, *spatial); normalize over dim 1.
            N, C = x.shape[0], x.shape[1]
            assert C == self.C
            hw = 1
            for s in x.shape[2:]:
                hw *= int(s)
            x3d = x.reshape(N, C, hw)            # free reshape, no transpose
            y3d = _layernorm_channels_first(x3d, self.weight, self.bias, self.eps)
            return y3d.reshape(x.shape)


# ---------------------------------------------------------------------------
# References + self-test
# ---------------------------------------------------------------------------
def _ref_channels_first(x, w, b, eps):
    u = jnp.mean(x, axis=1, keepdims=True)
    s = jnp.mean((x - u) ** 2, axis=1, keepdims=True)
    xn = (x - u) / jnp.sqrt(s + eps)
    wb = w.reshape((1, -1) + (1,) * (x.ndim - 2))
    bb = b.reshape((1, -1) + (1,) * (x.ndim - 2))
    return wb * xn + bb


def _ref_channels_last(x, w, b, eps):
    u = jnp.mean(x, axis=-1, keepdims=True)
    s = jnp.mean((x - u) ** 2, axis=-1, keepdims=True)
    return (x - u) / jnp.sqrt(s + eps) * w + b


if __name__ == "__main__":
    key = jax.random.PRNGKey(0)
    k1, k2, k3, k4, k5 = jax.random.split(key, 5)

    # 1) channels_first: NCHW input, like ConvNeXt blocks.
    x_cf = jax.random.normal(k1, (2, 4, 16, 16), dtype=jnp.float32)
    ln_cf = LayerNormPallas(4, eps=1e-6, data_format="channels_first")
    y_cf = jax.block_until_ready(ln_cf(x_cf))
    ref_cf = _ref_channels_first(x_cf, ln_cf.weight, ln_cf.bias, ln_cf.eps)
    assert y_cf.shape == x_cf.shape
    assert jnp.allclose(y_cf, ref_cf, atol=1e-4, rtol=1e-4)

    # 2) channels_last: NHWC input, F.layer_norm over last dim (packed path).
    x_cl = jax.random.normal(k2, (2, 16, 16, 4), dtype=jnp.float32)
    ln_cl = LayerNormPallas(4, eps=1e-6, data_format="channels_last")
    y_cl = jax.block_until_ready(ln_cl(x_cl))
    ref_cl = _ref_channels_last(x_cl, ln_cl.weight, ln_cl.bias, ln_cl.eps)
    assert y_cl.shape == x_cl.shape
    assert jnp.allclose(y_cl, ref_cl, atol=1e-4, rtol=1e-4)

    # 3) channels_first, small spatial extent + batch blocking (7x7, N=3).
    x_cf2 = jax.random.normal(k3, (3, 4, 7, 7), dtype=jnp.float32)
    y_cf2 = jax.block_until_ready(ln_cf(x_cf2))
    ref_cf2 = _ref_channels_first(x_cf2, ln_cf.weight, ln_cf.bias, ln_cf.eps)
    assert jnp.allclose(y_cf2, ref_cf2, atol=1e-4, rtol=1e-4)

    # 4) channels_last, ragged row count (M=50 not a multiple of G=32).
    x_cl2 = jax.random.normal(k4, (2, 5, 5, 4), dtype=jnp.float32)
    y_cl2 = jax.block_until_ready(ln_cl(x_cl2))
    ref_cl2 = _ref_channels_last(x_cl2, ln_cl.weight, ln_cl.bias, ln_cl.eps)
    assert jnp.allclose(y_cl2, ref_cl2, atol=1e-4, rtol=1e-4)

    # 5) channels_last, C a multiple of 128 (plain MXU-reduce path).
    x_cl3 = jax.random.normal(k5, (2, 4, 128), dtype=jnp.float32)
    ln_cl3 = LayerNormPallas(128, eps=1e-6, data_format="channels_last")
    y_cl3 = jax.block_until_ready(ln_cl3(x_cl3))
    ref_cl3 = _ref_channels_last(x_cl3, ln_cl3.weight, ln_cl3.bias, ln_cl3.eps)
    assert jnp.allclose(y_cl3, ref_cl3, atol=1e-4, rtol=1e-4)

    print("KERNEL_OK")
</pallas_src>

<mosaic_0001>
module attributes {stable_mosaic.version = 11 : i64} {
  func.func @_ln_sublanes_kernel(%arg0: i32, %arg1: i32, %arg2: memref<2x4x256xf32, #tpu.memory_space<vmem>>, %arg3: memref<4x1xf32, #tpu.memory_space<vmem>>, %arg4: memref<4x1xf32, #tpu.memory_space<vmem>>, %arg5: memref<2x4x256xf32, #tpu.memory_space<vmem>>) attributes {dimension_semantics = [#tpu.dimension_semantics<parallel>, #tpu.dimension_semantics<parallel>], iteration_bounds = array<i64: 1, 1>, scalar_prefetch = 0 : i64, scratch_operands = 0 : i64, tpu.core_type = #tpu.core_type<tc>, window_params = [{transform_indices = @transform_0, window_bounds = array<i64: 2, 4, 256>}, {pipeline_mode = #tpu.pipeline_mode<synchronous>, transform_indices = @transform_1, window_bounds = array<i64: 4, 1>}, {pipeline_mode = #tpu.pipeline_mode<synchronous>, transform_indices = @transform_2, window_bounds = array<i64: 4, 1>}, {transform_indices = @transform_3, window_bounds = array<i64: 2, 4, 256>}]} {
    %c0 = arith.constant 0 : index
    %c0_0 = arith.constant 0 : index
    %c0_1 = arith.constant 0 : index
    %0 = vector.load %arg2[%c0, %c0_0, %c0_1] : memref<2x4x256xf32, #tpu.memory_space<vmem>>, vector<2x4x256xf32>
    %cst = arith.constant dense<0.000000e+00> : vector<2x256xf32>
    %1 = vector.multi_reduction <add>, %0, %cst [1] : vector<2x4x256xf32> to vector<2x256xf32>
    %2 = vector.shape_cast %1 : vector<2x256xf32> to vector<2x1x256xf32>
    %cst_2 = arith.constant 4.000000e+00 : f32
    %3 = vector.broadcast %cst_2 : f32 to vector<2x1x256xf32>
    %4 = arith.divf %2, %3 : vector<2x1x256xf32>
    %5 = vector.broadcast %4 : vector<2x1x256xf32> to vector<2x4x256xf32>
    %6 = arith.subf %0, %5 : vector<2x4x256xf32>
    %7 = arith.mulf %6, %6 : vector<2x4x256xf32>
    %cst_3 = arith.constant dense<0.000000e+00> : vector<2x256xf32>
    %8 = vector.multi_reduction <add>, %7, %cst_3 [1] : vector<2x4x256xf32> to vector<2x256xf32>
    %9 = vector.shape_cast %8 : vector<2x256xf32> to vector<2x1x256xf32>
    %cst_4 = arith.constant 4.000000e+00 : f32
    %10 = vector.broadcast %cst_4 : f32 to vector<2x1x256xf32>
    %11 = arith.divf %9, %10 : vector<2x1x256xf32>
    %cst_5 = arith.constant 9.99999997E-7 : f32
    %12 = vector.broadcast %cst_5 : f32 to vector<2x1x256xf32>
    %13 = arith.addf %11, %12 : vector<2x1x256xf32>
    %14 = math.rsqrt %13 : vector<2x1x256xf32>
    %15 = vector.broadcast %14 : vector<2x1x256xf32> to vector<2x4x256xf32>
    %16 = arith.mulf %6, %15 : vector<2x4x256xf32>
    %c0_6 = arith.constant 0 : index
    %c0_7 = arith.constant 0 : index
    %17 = vector.load %arg3[%c0_6, %c0_7] : memref<4x1xf32, #tpu.memory_space<vmem>>, vector<4x1xf32>
    %18 = vector.shape_cast %17 : vector<4x1xf32> to vector<1x4x1xf32>
    %19 = vector.broadcast %18 : vector<1x4x1xf32> to vector<2x4x256xf32>
    %20 = arith.mulf %16, %19 : vector<2x4x256xf32>
    %c0_8 = arith.constant 0 : index
    %c0_9 = arith.constant 0 : index
    %21 = vector.load %arg4[%c0_8, %c0_9] : memref<4x1xf32, #tpu.memory_space<vmem>>, vector<4x1xf32>
    %22 = vector.shape_cast %21 : vector<4x1xf32> to vector<1x4x1xf32>
    %23 = vector.broadcast %22 : vector<1x4x1xf32> to vector<2x4x256xf32>
    %24 = arith.addf %20, %23 : vector<2x4x256xf32>
    %c0_10 = arith.constant 0 : index
    %c0_11 = arith.constant 0 : index
    %c0_12 = arith.constant 0 : index
    %25 = vector.load %arg5[%c0_10, %c0_11, %c0_12] : memref<2x4x256xf32, #tpu.memory_space<vmem>>, vector<2x4x256xf32>
    tpu.vector_store %arg5[%c0_10, %c0_11, %c0_12], %24 {strides = array<i32>} : memref<2x4x256xf32, #tpu.memory_space<vmem>>, vector<2x4x256xf32>,
    return
  }
  func.func @transform_0(%arg0: i32, %arg1: i32) -> (i32, i32, i32) {
    %c0_i32 = arith.constant 0 : i32
    %c0_i32_0 = arith.constant 0 : i32
    return %arg0, %c0_i32, %arg1 : i32, i32, i32
  }
  func.func @transform_1(%arg0: i32, %arg1: i32) -> (i32, i32) {
    %c0_i32 = arith.constant 0 : i32
    %c0_i32_0 = arith.constant 0 : i32
    %c0_i32_1 = arith.constant 0 : i32
    return %c0_i32, %c0_i32_0 : i32, i32
  }
  func.func @transform_2(%arg0: i32, %arg1: i32) -> (i32, i32) {
    %c0_i32 = arith.constant 0 : i32
    %c0_i32_0 = arith.constant 0 : i32
    %c0_i32_1 = arith.constant 0 : i32
    return %c0_i32, %c0_i32_0 : i32, i32
  }
  func.func @transform_3(%arg0: i32, %arg1: i32) -> (i32, i32, i32) {
    %c0_i32 = arith.constant 0 : i32
    %c0_i32_0 = arith.constant 0 : i32
    return %arg0, %c0_i32, %arg1 : i32, i32, i32
  }
}

</mosaic_0001>

<llo_original>
// kernel: tpu_custom_call.1
$region0: #{tpu_custom_call.1}
  #allocation0 [shape = 'u32[]', space=smem, size = 0x4, offset = 0x4, fixed_abs, tag = 'smem constant byte address 0x4 - core index']
  #allocation1 [shape = 'u32[144,128]{1,0:T(1,128)}', space=vmem, size = 0x12000, scoped, tag = 'internal scratch']
  %s0 = inlined_call_operand.hbm [shape: f32[2,4,256], index: 0, kind: input, shape index: {}]
  %s1 = inlined_call_operand.vmem [shape: f32[4,1], index: 1, kind: input, shape index: {}]
  %s2 = inlined_call_operand.vmem [shape: f32[4,1], index: 2, kind: input, shape index: {}]
  %s3 = inlined_call_operand.hbm [shape: f32[2,4,256], index: 3, kind: output, shape index: {}]
  %s4 = sld [smem:[#allocation0]]
  $region26: #{tpu_custom_call.1} parent=0
    _
  %s6 = ssub.s32 1, %s4
  %s7 = scalar_select 0, %s6, %s4
  $region1: #{tpu_custom_call.1} parent=0
    #allocation2 [shape = 'u8[8192]{0}', space=vmem, size = 0x2000, scoped, tag = 'input window, operand 0, single buffered']
    #allocation3 [shape = 's32[1]{0}', space=sflag, size = 0x4, scoped, tag = 'scoped memory for tpu_custom_call.1']
    #allocation4 [shape = 's32[1]{0}', space=sflag, size = 0x4, scoped, tag = 'scoped memory for tpu_custom_call.1']
    #allocation5 [shape = 'u8[8192]{0}', space=vmem, size = 0x2000, scoped, tag = 'output window, operand 0, single buffered']
    %8 = vsyncpa [#allocation3], 0
    %9 = vsyncpa [#allocation4], 0
    // Predicated region
    $region2: #{tpu_custom_call.1} parent=1 // pred_check
      _
    $region3: #{tpu_custom_call.1} parent=1 // pred_check_branch
      %11 = sbr.rel (0) target = $region5
    $region4: #{tpu_custom_call.1} parent=1 // pred_region
      %s13 = ssub.s32 256, 256
      %14 = vsyncadd [#allocation3], %s13
      %s15 = sshll.u32 [#allocation2], 4
      %s16 = int_to_ptr.vmem [resolvable:$true] %s15
      %21 = dma.hbm_to_vmem [thread:$0]  %s0, 256, %s16, [#allocation3], 128, 128, 8
    $region5: #{tpu_custom_call.1} parent=1 // pred_fallthru
      _
    // Predicated region
    $region6: #{tpu_custom_call.1} parent=1 // pred_check
      _
    $region7: #{tpu_custom_call.1} parent=1 // pred_check_branch
      %23 = sbr.rel (0) target = $region9
    $region8: #{tpu_custom_call.1} parent=1 // pred_region
      _
    $region9: #{tpu_custom_call.1} parent=1 // pred_fallthru
      _
    // Predicated region
    $region10: #{tpu_custom_call.1} parent=1 // pred_check
      _
    $region11: #{tpu_custom_call.1} parent=1 // pred_check_branch
      %25 = sbr.rel (0) target = $region13
    $region12: #{tpu_custom_call.1} parent=1 // pred_region
      _
    $region13: #{tpu_custom_call.1} parent=1 // pred_fallthru
      _
    // Predicated region
    $region14: #{tpu_custom_call.1} parent=1 // pred_check
      _
    $region15: #{tpu_custom_call.1} parent=1 // pred_check_branch
      %27 = sbr.rel (0) target = $region17
    $region16: #{tpu_custom_call.1} parent=1 // pred_region
      %28 = dma.done [#allocation3], 256
    $region17: #{tpu_custom_call.1} parent=1 // pred_fallthru
      _
    %v29 = vld [vmem:[#allocation2] sm:$0xff]
    %v30 = vld [vmem:[#allocation2 + $0x8] sm:$0xff]
    %v33 = vcombine.high %v29, %v29
    %v34 = vcombine.high %v30, %v30
    %vm37 = vcmask 1043456
    %v38 = vsel %vm37, %v29, 0.0
    %v39 = vrot.slane %v38, 4
    %v40 = vadd.f32 %v38, %v39
    %v41 = vrot.slane %v40, 2
    %v42 = vadd.f32 %v40, %v41
    %v43 = vrot.slane %v42, 1
    %v44 = vadd.f32 %v42, %v43
    %v45 = vsel %vm37, %v33, 0.0
    %v46 = vrot.slane %v45, 4
    %v47 = vadd.f32 %v45, %v46
    %v48 = vrot.slane %v47, 2
    %v49 = vadd.f32 %v47, %v48
    %v50 = vrot.slane %v49, 1
    %v51 = vadd.f32 %v49, %v50
    %v52 = vsel %vm37, %v30, 0.0
    %v53 = vrot.slane %v52, 4
    %v54 = vadd.f32 %v52, %v53
    %v55 = vrot.slane %v54, 2
    %v56 = vadd.f32 %v54, %v55
    %v57 = vrot.slane %v56, 1
    %v58 = vadd.f32 %v56, %v57
    %v59 = vsel %vm37, %v34, 0.0
    %v60 = vrot.slane %v59, 4
    %v61 = vadd.f32 %v59, %v60
    %v62 = vrot.slane %v61, 2
    %v63 = vadd.f32 %v61, %v62
    %v64 = vrot.slane %v63, 1
    %v65 = vadd.f32 %v63, %v64
    %v66 = vrcp.pop 4.0
    %v67 = vmul.f32 %v44, %v66
    %v68 = vmul.f32 %v51, %v66
    %v69 = vmul.f32 %v58, %v66
    %v70 = vmul.f32 %v65, %v66
    %v75 = vcombine.low %v67, %v68
    %v76 = vcombine.low %v69, %v70
    %v79 = vsub.f32 %v29, %v75
    %v80 = vsub.f32 %v30, %v76
    %v81 = vmul.f32 %v79, %v79
    %v82 = vmul.f32 %v80, %v80
    %v85 = vcombine.high %v81, %v81
    %v86 = vcombine.high %v82, %v82
    %v89 = vsel %vm37, %v81, 0.0
    %v90 = vrot.slane %v89, 4
    %v91 = vadd.f32 %v89, %v90
    %v92 = vrot.slane %v91, 2
    %v93 = vadd.f32 %v91, %v92
    %v94 = vrot.slane %v93, 1
    %v95 = vadd.f32 %v93, %v94
    %v96 = vsel %vm37, %v85, 0.0
    %v97 = vrot.slane %v96, 4
    %v98 = vadd.f32 %v96, %v97
    %v99 = vrot.slane %v98, 2
    %v100 = vadd.f32 %v98, %v99
    %v101 = vrot.slane %v100, 1
    %v102 = vadd.f32 %v100, %v101
    %v103 = vsel %vm37, %v82, 0.0
    %v104 = vrot.slane %v103, 4
    %v105 = vadd.f32 %v103, %v104
    %v106 = vrot.slane %v105, 2
    %v107 = vadd.f32 %v105, %v106
    %v108 = vrot.slane %v107, 1
    %v109 = vadd.f32 %v107, %v108
    %v110 = vsel %vm37, %v86, 0.0
    %v111 = vrot.slane %v110, 4
    %v112 = vadd.f32 %v110, %v111
    %v113 = vrot.slane %v112, 2
    %v114 = vadd.f32 %v112, %v113
    %v115 = vrot.slane %v114, 1
    %v116 = vadd.f32 %v114, %v115
    %v117 = vmul.f32 %v95, %v66
    %v118 = vmul.f32 %v102, %v66
    %v119 = vmul.f32 %v109, %v66
    %v120 = vmul.f32 %v116, %v66
    %v121 = vadd.f32 %v117, 1e-06
    %v122 = vadd.f32 %v118, 1e-06
    %v123 = vadd.f32 %v119, 1e-06
    %v124 = vadd.f32 %v120, 1e-06
    %v125 = vrsqrt.pop %v121
    %v126 = vrsqrt.pop %v122
    %v127 = vrsqrt.pop %v123
    %v128 = vrsqrt.pop %v124
    %v133 = vcombine.low %v125, %v126
    %v134 = vcombine.low %v127, %v128
    %v137 = vmul.f32 %v79, %v133
    %v138 = vmul.f32 %v80, %v134
    %v139 = vld [vmem:[%s1] sm:$0xf]
    %141 = vset.pattern.permute.xlu0 0
    %142 = vperm.xlu0 %141, %v139
    %v143 = vpop.permute.xlu0 %142
    %v145 = vunpack.c.l.s4 839922192
    %v146 = vunpack.c.0.s8 %v145
    %v147 = vlaneseq
    %v148 = vshrl.u32 %v147, 7
    %v149 = vsub.s32 %v146, %v148
    %v150 = vrot.slane %v143, %v149
    %v152 = vmul.f32 %v137, %v150
    %v153 = vmul.f32 %v138, %v150
    %v154 = vld [vmem:[%s2] sm:$0xf]
    %156 = vset.pattern.permute.xlu0 0
    %157 = vperm.xlu0 %156, %v154
    %v158 = vpop.permute.xlu0 %157
    %v160 = vunpack.c.l.s4 839922192
    %v161 = vunpack.c.0.s8 %v160
    %v162 = vlaneseq
    %v163 = vshrl.u32 %v162, 7
    %v164 = vsub.s32 %v161, %v163
    %v165 = vrot.slane %v158, %v164
    %v167 = vadd.f32 %v152, %v165
    %v168 = vadd.f32 %v153, %v165
    %169 = vst [vmem:[#allocation5] sm:$0xff] %v167
    %170 = vst [vmem:[#allocation5 + $0x8] sm:$0xff] %v168
    // Predicated region
    $region18: #{tpu_custom_call.1} parent=1 // pred_check
      _
    $region19: #{tpu_custom_call.1} parent=1 // pred_check_branch
      %172 = sbr.rel (0) target = $region21
    $region20: #{tpu_custom_call.1} parent=1 // pred_region
      %s174 = ssub.s32 256, 256
      %175 = vsyncadd [#allocation4], %s174
      %s176 = sshll.u32 [#allocation5], 4
      %s177 = int_to_ptr.vmem [resolvable:$true] %s176
      %182 = dma.vmem_to_hbm [thread:$0]  %s177, 256, %s3, [#allocation4], 128, 128, 8
    $region21: #{tpu_custom_call.1} parent=1 // pred_fallthru
      _
    // Predicated region
    $region22: #{tpu_custom_call.1} parent=1 // pred_check
      _
    $region23: #{tpu_custom_call.1} parent=1 // pred_check_branch
      %184 = sbr.rel (0) target = $region25
    $region24: #{tpu_custom_call.1} parent=1 // pred_region
      %185 = dma.done [#allocation4], 256
    $region25: #{tpu_custom_call.1} parent=1 // pred_fallthru
      _
    %186 = vsyncpa [#allocation3], 1
    %187 = vsyncpa [#allocation4], 1

</llo_original>
